<compile_context>
chip_gen: v7x
topology: tpu7x:2x2x1
jax: 0.10.0
libtpu: 0.0.40
codegen_flags: <defaults>
</compile_context>

<pallas_src>
import jax
import jax.numpy as jnp
from jax.experimental import pallas as pl
from jax.experimental.pallas import tpu as pltpu


# ---------------------------------------------------------------------------
# Generation-aware VMEM budgeting
# ---------------------------------------------------------------------------

def _tpu_vmem_bytes():
    """Physical VMEM per TensorCore; conservative 64 MiB if the query fails."""
    try:
        info = pltpu.get_tpu_info()
        v = getattr(info, "vmem_capacity_bytes", None)
        if v:
            return int(v)
    except Exception:
        pass
    return 64 << 20


def _budgets():
    phys = _tpu_vmem_bytes()
    if phys >= (96 << 20):
        # v5e / v6e: 128 MiB physical VMEM -> wide single-pass window, big tiles.
        return {"phys": phys, "single_budget": 100 << 20, "cap": 112 << 20,
                "tile_bytes": 6 << 20}
    # v7x: 64 MiB physical. Never request it all; leave headroom for the
    # gamma/beta buffers, double-buffer bookkeeping and compiler scratch.
    return {"phys": phys, "single_budget": 44 << 20, "cap": 52 << 20,
            "tile_bytes": 2 << 20}


def _clamp_vmem(nbytes, cap):
    return int(min(max(nbytes, 4 << 20), cap))


def _pick_chunk(C, HW):
    # Rows per in-kernel chunk: ~2 MiB of f32 temporaries, sublane multiple.
    x8 = max(8, ((2 << 20) // max(HW * 4, 1)) // 8 * 8)
    return C if C <= x8 else x8


def _single_pass_vmem_need(C, HW, itemsize, chunk):
    slab = C * HW * itemsize
    scratch = C * 128 * 4                      # (1, C, 1) f32 scratch, lane-padded
    # 2x double-buffered in + 2x out + bounded f32 chunk temporaries + columns.
    return 4 * slab + 3 * chunk * HW * 4 + 3 * scratch + (2 << 20)


# ---------------------------------------------------------------------------
# Kernels
# ---------------------------------------------------------------------------

def _make_single_pass_kernel(C, HW, chunk):
    n_full = C // chunk
    rem = C - n_full * chunk

    def kernel(x_ref, gamma_ref, beta_ref, o_ref, ssq_ref):
        # x_ref / o_ref: (1, C, HW); gamma_ref / beta_ref / ssq_ref: (1, C, 1) f32.

        def foreach_chunk(fn):
            if n_full == 1 and rem == 0:
                fn(0, chunk)
                return
            if n_full > 0:
                @pl.loop(0, n_full)
                def _(i):
                    fn(pl.multiple_of(i * chunk, chunk), chunk)
            if rem > 0:
                fn(n_full * chunk, rem)

        # Phase 1: per-channel sum-of-squares over H*W (f32 accumulation),
        # chunked over sublanes so f32 temporaries stay ~chunk*HW*4 bytes.
        def ssq_chunk(c0, rows):
            xs = x_ref[:, pl.ds(c0, rows), :].astype(jnp.float32)
            ssq_ref[:, pl.ds(c0, rows), :] = jnp.sum(xs * xs, axis=-1, keepdims=True)

        foreach_chunk(ssq_chunk)

        # Tiny per-channel math; exact division (runs once per channel column).
        gx = jnp.sqrt(ssq_ref[...])                                # (1, C, 1)
        nx = gx / (jnp.mean(gx, axis=1, keepdims=True) + 1e-6)
        ssq_ref[...] = gamma_ref[...] * nx + 1.0                   # reuse scratch: scale

        # Phase 2: elementwise affine in the input dtype (bf16-native VALU on
        # v6e/v7x; on v5e keeping bf16 still halves the HBM bytes).
        def apply_chunk(c0, rows):
            xs = x_ref[:, pl.ds(c0, rows), :]
            sc = ssq_ref[:, pl.ds(c0, rows), :].astype(xs.dtype)
            bt = beta_ref[:, pl.ds(c0, rows), :].astype(xs.dtype)
            o_ref[:, pl.ds(c0, rows), :] = xs * sc + bt

        foreach_chunk(apply_chunk)

    return kernel


def _make_stats_scale_kernel(HW, t):
    partial_tail = (HW % t) != 0

    def kernel(x_ref, gamma_ref, scale_ref):
        # x_ref: (1, C, t); gamma_ref / scale_ref: (1, C, 1) f32.
        i = pl.program_id(1)

        @pl.when(i == 0)
        def _init():
            scale_ref[...] = jnp.zeros_like(scale_ref)

        xf = x_ref[...].astype(jnp.float32)
        if partial_tail:
            # Mask lanes past HW on the (possibly partial) last tile; no jnp.pad.
            col = jax.lax.broadcasted_iota(jnp.int32, (1, 1, t), 2) + i * t
            xf = jnp.where(col < HW, xf, 0.0)
        scale_ref[...] += jnp.sum(xf * xf, axis=-1, keepdims=True)

        # Fuse the sqrt / channel-mean / scale math into the last reduction step
        # so pass 1 emits the scale directly (no inter-pass XLA ops / round-trip).
        @pl.when(i == pl.num_programs(1) - 1)
        def _finish():
            gx = jnp.sqrt(scale_ref[...])                          # (1, C, 1)
            nx = gx / (jnp.mean(gx, axis=1, keepdims=True) + 1e-6)
            scale_ref[...] = gamma_ref[...] * nx + 1.0

    return kernel


def _apply_kernel(x_ref, scale_ref, beta_ref, o_ref):
    x = x_ref[...]                                  # (1, C, t)
    sc = scale_ref[...].astype(x.dtype)             # (1, C, 1)
    bt = beta_ref[...].astype(x.dtype)              # (1, C, 1)
    o_ref[...] = x * sc + bt


# ---------------------------------------------------------------------------
# Wrappers
# ---------------------------------------------------------------------------

def _grn_single_pass(x3, g, b, *, chunk, vmem_limit):
    N, C, HW = x3.shape
    itemsize = jnp.dtype(x3.dtype).itemsize
    return pl.pallas_call(
        _make_single_pass_kernel(C, HW, chunk),
        out_shape=jax.ShapeDtypeStruct((N, C, HW), x3.dtype),
        grid=(N,),
        in_specs=[
            pl.BlockSpec((1, C, HW), lambda n: (n, 0, 0)),
            pl.BlockSpec((1, C, 1), lambda n: (0, 0, 0)),
            pl.BlockSpec((1, C, 1), lambda n: (0, 0, 0)),
        ],
        out_specs=pl.BlockSpec((1, C, HW), lambda n: (n, 0, 0)),
        scratch_shapes=[pltpu.VMEM((1, C, 1), jnp.float32)],
        compiler_params=pltpu.CompilerParams(
            dimension_semantics=("parallel",),
            vmem_limit_bytes=vmem_limit),
        cost_estimate=pl.CostEstimate(
            flops=4 * N * C * HW,
            transcendentals=N * C,
            bytes_accessed=2 * N * C * HW * itemsize + 2 * C * 4),
    )(x3, g, b)


def _grn_two_pass(x3, g, b, *, tile_bytes, vmem_cap):
    N, C, HW = x3.shape
    itemsize = jnp.dtype(x3.dtype).itemsize

    # Lane-axis tile: a multiple of 128, or the full HW. Partial last tiles are
    # masked in-kernel, so there is no padded DMA and no jnp.pad copy.
    t = max(128, (tile_bytes // max(C * itemsize, 1)) // 128 * 128)
    if t >= HW:
        t = HW
    n_t = pl.cdiv(HW, t)
    in_tile = C * t * itemsize
    f32_tile = C * t * 4
    col_bytes = C * 128 * 4                        # (1, C, 1) blocks, lane-padded

    # Pass 1: per-(n, c) sum-of-squares over HW tiles; scale produced in-place on
    # the last tile. The (1, C, 1) output block stays resident across the HW axis.
    scale = pl.pallas_call(
        _make_stats_scale_kernel(HW, t),
        out_shape=jax.ShapeDtypeStruct((N, C, 1), jnp.float32),
        grid=(N, n_t),
        in_specs=[
            pl.BlockSpec((1, C, t), lambda n, i: (n, 0, i)),
            pl.BlockSpec((1, C, 1), lambda n, i: (0, 0, 0)),
        ],
        out_specs=pl.BlockSpec((1, C, 1), lambda n, i: (n, 0, 0)),
        compiler_params=pltpu.CompilerParams(
            dimension_semantics=("parallel", "arbitrary"),
            vmem_limit_bytes=_clamp_vmem(
                2 * in_tile + 3 * f32_tile + 4 * col_bytes + (2 << 20), vmem_cap)),
        cost_estimate=pl.CostEstimate(
            flops=3 * N * C * HW,
            transcendentals=N * C,
            bytes_accessed=N * C * HW * itemsize + N * C * 4),
    )(x3, g)

    # Pass 2: embarrassingly parallel elementwise apply over (N, HW tiles); both
    # axes "parallel" keeps v7x's two TensorCores fed even at N == 1.
    out = pl.pallas_call(
        _apply_kernel,
        out_shape=jax.ShapeDtypeStruct((N, C, HW), x3.dtype),
        grid=(N, n_t),
        in_specs=[
            pl.BlockSpec((1, C, t), lambda n, i: (n, 0, i)),
            pl.BlockSpec((1, C, 1), lambda n, i: (n, 0, 0)),
            pl.BlockSpec((1, C, 1), lambda n, i: (0, 0, 0)),
        ],
        out_specs=pl.BlockSpec((1, C, t), lambda n, i: (n, 0, i)),
        compiler_params=pltpu.CompilerParams(
            dimension_semantics=("parallel", "parallel"),
            vmem_limit_bytes=_clamp_vmem(4 * in_tile + 4 * col_bytes + (2 << 20), vmem_cap)),
        cost_estimate=pl.CostEstimate(
            flops=2 * N * C * HW,
            transcendentals=0,
            bytes_accessed=2 * N * C * HW * itemsize + N * C * 4),
    )(x3, scale, b)
    return out


def grn(x, gamma, beta, *, force_two_pass=False):
    """GRN with PyTorch semantics. x: (N, C, H, W); gamma/beta: (1, C, 1, 1)."""
    N, C, H, W = x.shape
    HW = H * W
    # NCHW kept end-to-end: merging/splitting the trailing contiguous dims is a
    # free reshape, so the wrapper adds zero layout-change reads/writes.
    x3 = x.reshape(N, C, HW)
    g = jnp.asarray(gamma).reshape(1, C, 1).astype(jnp.float32)
    b = jnp.asarray(beta).reshape(1, C, 1).astype(jnp.float32)

    cfg = _budgets()
    itemsize = jnp.dtype(x.dtype).itemsize
    slab = C * HW * itemsize
    chunk = _pick_chunk(C, HW)
    need = _single_pass_vmem_need(C, HW, itemsize, chunk)

    use_two_pass = force_two_pass or need > cfg["single_budget"]
    # v7x batch-1: grid=(1,) would idle the second TensorCore; the two-pass
    # path's (N, hw-tile) parallel grids keep both cores fed once the slab is
    # big enough to amortize the extra read.
    if (not use_two_pass and N == 1 and cfg["phys"] < (96 << 20)
            and slab >= 4 * cfg["tile_bytes"] and HW >= 512):
        use_two_pass = True

    if use_two_pass:
        out3 = _grn_two_pass(x3, g, b, tile_bytes=cfg["tile_bytes"],
                             vmem_cap=cfg["cap"])
    else:
        out3 = _grn_single_pass(x3, g, b, chunk=chunk,
                                vmem_limit=_clamp_vmem(need, cfg["cap"]))
    return out3.reshape(N, C, H, W)


def grn_reference(x, gamma, beta):
    gx = jnp.sqrt(jnp.sum(x * x, axis=(2, 3), keepdims=True))
    nx = gx / (jnp.mean(gx, axis=1, keepdims=True) + 1e-6)
    return x * (gamma * nx + 1.0) + beta


if __name__ == "__main__":
    key = jax.random.PRNGKey(0)
    kx, kg, kb, k2, k3 = jax.random.split(key, 5)

    # --- primary shapes (module-consistent, small) --------------------------
    N, C, H, W = 2, 4, 16, 16
    x = jax.random.normal(kx, (N, C, H, W), dtype=jnp.float32)
    # nn.Parameter(torch.zeros(...)) -> small non-zero values so the affine
    # path is actually exercised.
    gamma = 0.1 * jax.random.normal(kg, (1, C, 1, 1), dtype=jnp.float32)
    beta = 0.1 * jax.random.normal(kb, (1, C, 1, 1), dtype=jnp.float32)
    ref = grn_reference(x, gamma, beta)

    # 1) fused single-pass path (default dispatch for this size)
    out = jax.block_until_ready(grn(x, gamma, beta))
    assert out.shape == (N, C, H, W)
    assert jnp.allclose(out, ref, atol=1e-4, rtol=1e-4), (
        f"single-pass max abs err {jnp.max(jnp.abs(out - ref))}")

    # 2) two-pass fallback path (taken when the (C, HW) slab does not fit VMEM)
    out2 = jax.block_until_ready(grn(x, gamma, beta, force_two_pass=True))
    assert jnp.allclose(out2, ref, atol=1e-4, rtol=1e-4), (
        f"two-pass max abs err {jnp.max(jnp.abs(out2 - ref))}")

    # 3) two-pass with a partial (masked) last HW tile: HW=190, t forced to 128
    C3, H3, W3 = 8, 10, 19
    x3n = jax.random.normal(k2, (1, C3, H3, W3), dtype=jnp.float32)
    g3 = 0.1 * jnp.arange(C3, dtype=jnp.float32).reshape(1, C3, 1, 1)
    b3 = 0.05 * jnp.arange(C3, dtype=jnp.float32).reshape(1, C3, 1, 1)
    ref3 = grn_reference(x3n, g3, b3)
    out3 = _grn_two_pass(x3n.reshape(1, C3, H3 * W3),
                         g3.reshape(1, C3, 1), b3.reshape(1, C3, 1),
                         tile_bytes=C3 * 4 * 128, vmem_cap=52 << 20)
    out3 = jax.block_until_ready(out3).reshape(1, C3, H3, W3)
    assert jnp.allclose(out3, ref3, atol=1e-4, rtol=1e-4), (
        f"masked two-pass max abs err {jnp.max(jnp.abs(out3 - ref3))}")

    # 4) single-pass with the chunked pl.loop path exercised (chunk < C, + tail)
    C4, H4, W4 = 20, 8, 8
    x4 = jax.random.normal(k3, (1, C4, H4, W4), dtype=jnp.float32)
    g4 = 0.1 * jnp.ones((1, C4, 1, 1), jnp.float32)
    b4 = -0.1 * jnp.ones((1, C4, 1, 1), jnp.float32)
    ref4 = grn_reference(x4, g4, b4)
    out4 = _grn_single_pass(x4.reshape(1, C4, H4 * W4),
                            g4.reshape(1, C4, 1), b4.reshape(1, C4, 1),
                            chunk=8, vmem_limit=8 << 20)
    out4 = jax.block_until_ready(out4).reshape(1, C4, H4, W4)
    assert jnp.allclose(out4, ref4, atol=1e-4, rtol=1e-4), (
        f"chunked single-pass max abs err {jnp.max(jnp.abs(out4 - ref4))}")

    print("KERNEL_OK")
</pallas_src>

<mosaic_0001>
module attributes {stable_mosaic.version = 11 : i64} {
  func.func @kernel(%arg0: i32, %arg1: memref<1x4x256xf32, #tpu.memory_space<vmem>>, %arg2: memref<1x4x1xf32, #tpu.memory_space<vmem>>, %arg3: memref<1x4x1xf32, #tpu.memory_space<vmem>>, %arg4: memref<1x4x256xf32, #tpu.memory_space<vmem>>, %arg5: memref<1x4x1xf32, #tpu.memory_space<vmem>>) attributes {dimension_semantics = [#tpu.dimension_semantics<parallel>], iteration_bounds = array<i64: 2>, scalar_prefetch = 0 : i64, scratch_operands = 1 : i64, tpu.core_type = #tpu.core_type<tc>, window_params = [{transform_indices = @transform_0, window_bounds = array<i64: 1, 4, 256>}, {pipeline_mode = #tpu.pipeline_mode<synchronous>, transform_indices = @transform_1, window_bounds = array<i64: 1, 4, 1>}, {pipeline_mode = #tpu.pipeline_mode<synchronous>, transform_indices = @transform_2, window_bounds = array<i64: 1, 4, 1>}, {transform_indices = @transform_3, window_bounds = array<i64: 1, 4, 256>}]} {
    %c0 = arith.constant 0 : index
    %c0_0 = arith.constant 0 : index
    %c0_1 = arith.constant 0 : index
    %0 = vector.load %arg1[%c0, %c0_0, %c0_1] : memref<1x4x256xf32, #tpu.memory_space<vmem>>, vector<1x4x256xf32>
    %1 = arith.mulf %0, %0 : vector<1x4x256xf32>
    %cst = arith.constant dense<0.000000e+00> : vector<1x4xf32>
    %2 = vector.multi_reduction <add>, %1, %cst [2] : vector<1x4x256xf32> to vector<1x4xf32>
    %3 = vector.shape_cast %2 : vector<1x4xf32> to vector<1x4x1xf32>
    %c0_2 = arith.constant 0 : index
    %c0_3 = arith.constant 0 : index
    %c0_4 = arith.constant 0 : index
    %4 = vector.load %arg5[%c0_2, %c0_3, %c0_4] : memref<1x4x1xf32, #tpu.memory_space<vmem>>, vector<1x4x1xf32>
    tpu.vector_store %arg5[%c0_2, %c0_3, %c0_4], %3 {strides = array<i32>} : memref<1x4x1xf32, #tpu.memory_space<vmem>>, vector<1x4x1xf32>,
    %c0_5 = arith.constant 0 : index
    %c0_6 = arith.constant 0 : index
    %c0_7 = arith.constant 0 : index
    %5 = vector.load %arg5[%c0_5, %c0_6, %c0_7] : memref<1x4x1xf32, #tpu.memory_space<vmem>>, vector<1x4x1xf32>
    %6 = math.sqrt %5 : vector<1x4x1xf32>
    %cst_8 = arith.constant dense<0.000000e+00> : vector<1x1xf32>
    %7 = vector.multi_reduction <add>, %6, %cst_8 [1] : vector<1x4x1xf32> to vector<1x1xf32>
    %8 = vector.shape_cast %7 : vector<1x1xf32> to vector<1x1x1xf32>
    %cst_9 = arith.constant 4.000000e+00 : f32
    %9 = vector.broadcast %cst_9 : f32 to vector<1x1x1xf32>
    %10 = arith.divf %8, %9 : vector<1x1x1xf32>
    %cst_10 = arith.constant 9.99999997E-7 : f32
    %11 = vector.broadcast %cst_10 : f32 to vector<1x1x1xf32>
    %12 = arith.addf %10, %11 : vector<1x1x1xf32>
    %13 = vector.broadcast %12 : vector<1x1x1xf32> to vector<1x4x1xf32>
    %14 = arith.divf %6, %13 : vector<1x4x1xf32>
    %c0_11 = arith.constant 0 : index
    %c0_12 = arith.constant 0 : index
    %c0_13 = arith.constant 0 : index
    %15 = vector.load %arg2[%c0_11, %c0_12, %c0_13] : memref<1x4x1xf32, #tpu.memory_space<vmem>>, vector<1x4x1xf32>
    %16 = arith.mulf %15, %14 : vector<1x4x1xf32>
    %cst_14 = arith.constant 1.000000e+00 : f32
    %17 = vector.broadcast %cst_14 : f32 to vector<1x4x1xf32>
    %18 = arith.addf %16, %17 : vector<1x4x1xf32>
    %c0_15 = arith.constant 0 : index
    %c0_16 = arith.constant 0 : index
    %c0_17 = arith.constant 0 : index
    %19 = vector.load %arg5[%c0_15, %c0_16, %c0_17] : memref<1x4x1xf32, #tpu.memory_space<vmem>>, vector<1x4x1xf32>
    tpu.vector_store %arg5[%c0_15, %c0_16, %c0_17], %18 {strides = array<i32>} : memref<1x4x1xf32, #tpu.memory_space<vmem>>, vector<1x4x1xf32>,
    %c0_18 = arith.constant 0 : index
    %c0_19 = arith.constant 0 : index
    %c0_20 = arith.constant 0 : index
    %20 = vector.load %arg1[%c0_18, %c0_19, %c0_20] : memref<1x4x256xf32, #tpu.memory_space<vmem>>, vector<1x4x256xf32>
    %c0_21 = arith.constant 0 : index
    %c0_22 = arith.constant 0 : index
    %c0_23 = arith.constant 0 : index
    %21 = vector.load %arg5[%c0_21, %c0_22, %c0_23] : memref<1x4x1xf32, #tpu.memory_space<vmem>>, vector<1x4x1xf32>
    %c0_24 = arith.constant 0 : index
    %c0_25 = arith.constant 0 : index
    %c0_26 = arith.constant 0 : index
    %22 = vector.load %arg3[%c0_24, %c0_25, %c0_26] : memref<1x4x1xf32, #tpu.memory_space<vmem>>, vector<1x4x1xf32>
    %23 = vector.broadcast %21 : vector<1x4x1xf32> to vector<1x4x256xf32>
    %24 = arith.mulf %20, %23 : vector<1x4x256xf32>
    %25 = vector.broadcast %22 : vector<1x4x1xf32> to vector<1x4x256xf32>
    %26 = arith.addf %24, %25 : vector<1x4x256xf32>
    %c0_27 = arith.constant 0 : index
    %c0_28 = arith.constant 0 : index
    %c0_29 = arith.constant 0 : index
    %27 = vector.load %arg4[%c0_27, %c0_28, %c0_29] : memref<1x4x256xf32, #tpu.memory_space<vmem>>, vector<1x4x256xf32>
    tpu.vector_store %arg4[%c0_27, %c0_28, %c0_29], %26 {strides = array<i32>} : memref<1x4x256xf32, #tpu.memory_space<vmem>>, vector<1x4x256xf32>,
    return
  }
  func.func @transform_0(%arg0: i32) -> (i32, i32, i32) {
    %c0_i32 = arith.constant 0 : i32
    %c0_i32_0 = arith.constant 0 : i32
    %c0_i32_1 = arith.constant 0 : i32
    return %arg0, %c0_i32, %c0_i32_0 : i32, i32, i32
  }
  func.func @transform_1(%arg0: i32) -> (i32, i32, i32) {
    %c0_i32 = arith.constant 0 : i32
    %c0_i32_0 = arith.constant 0 : i32
    %c0_i32_1 = arith.constant 0 : i32
    %c0_i32_2 = arith.constant 0 : i32
    return %c0_i32, %c0_i32_0, %c0_i32_1 : i32, i32, i32
  }
  func.func @transform_2(%arg0: i32) -> (i32, i32, i32) {
    %c0_i32 = arith.constant 0 : i32
    %c0_i32_0 = arith.constant 0 : i32
    %c0_i32_1 = arith.constant 0 : i32
    %c0_i32_2 = arith.constant 0 : i32
    return %c0_i32, %c0_i32_0, %c0_i32_1 : i32, i32, i32
  }
  func.func @transform_3(%arg0: i32) -> (i32, i32, i32) {
    %c0_i32 = arith.constant 0 : i32
    %c0_i32_0 = arith.constant 0 : i32
    %c0_i32_1 = arith.constant 0 : i32
    return %arg0, %c0_i32, %c0_i32_0 : i32, i32, i32
  }
}

</mosaic_0001>

<llo_original>
// kernel: tpu_custom_call.1
$region0: #{tpu_custom_call.1}
  #allocation0 [shape = 'u32[]', space=smem, size = 0x4, offset = 0x4, fixed_abs, tag = 'smem constant byte address 0x4 - core index']
  #allocation1 [shape = 'u32[144,128]{1,0:T(1,128)}', space=vmem, size = 0x12000, scoped, tag = 'internal scratch']
  #allocation2 [shape = 'f32[1,4,1]{2,1,0:T(4,128)}', space=vmem, size = 0x800, scoped, tag = 'scratch operand']
  %s0 = inlined_call_operand.hbm [shape: f32[2,4,256], index: 0, kind: input, shape index: {}]
  %s1 = inlined_call_operand.vmem [shape: f32[1,4,1], index: 1, kind: input, shape index: {}]
  %s2 = inlined_call_operand.vmem [shape: f32[1,4,1], index: 2, kind: input, shape index: {}]
  %s3 = inlined_call_operand.hbm [shape: f32[2,4,256], index: 3, kind: output, shape index: {}]
  %s4 = sld [smem:[#allocation0]]
  $region49: #{tpu_custom_call.1} parent=0
    _
  %s6 = ssub.s32 1, %s4
  %s7 = scalar_select 0, %s6, %s4
  $region1: #{tpu_custom_call.1} parent=0
    #allocation3 [shape = 'u8[8192]{0}', space=vmem, size = 0x2000, scoped, tag = 'input window, operand 0']
    #allocation4 [shape = 's32[2]{0}', space=sflag, size = 0x8, scoped, tag = 'scoped memory for tpu_custom_call.1']
    #allocation5 [shape = 's32[2]{0}', space=sflag, size = 0x8, scoped, tag = 'scoped memory for tpu_custom_call.1']
    #allocation6 [shape = 'u8[8192]{0}', space=vmem, size = 0x2000, scoped, tag = 'output window, operand 0']
    %8 = vsyncpa [#allocation4], 0
    %s9 = scalar_lea.sflag [#allocation4], 1
    %10 = vsyncpa %s9, 0
    %11 = vsyncpa [#allocation5], 0
    %s12 = scalar_lea.sflag [#allocation5], 1
    %13 = vsyncpa %s12, 0
    loop: start=0, step=1, limit=4
    $region2: #{tpu_custom_call.1} parent=1 // loop_pre_header
      _
    $region3: #{tpu_custom_call.1} parent=1 // loop_header
      %s15 = sphi 0, %s19
      %p16 = scmp.ge.s32.totalorder %s15, 4
      %s25 = sphi 0, %s27
      %s28 = sphi 0, %s25
      %s29 = sphi 0, %s28
      %s45 = sphi 0, %s29
      %s49 = sphi 0, %s49
      %s51 = sphi 0, %s49
      %s52 = sphi 0, %s51
      %s66 = sphi 0, %s52
      %s70 = sphi 0, %s70
      %s72 = sphi 0, %s70
      %s73 = sphi 0, %s72
      %s87 = sphi 0, %s73
      %s93 = sphi 0, %s95
      %s96 = sphi 0, %s93
      %s97 = sphi 0, %s96
      %s113 = sphi 0, %s97
    $region4: #{tpu_custom_call.1} parent=1 // loop_header_branch
      %18 = sbr.rel (%p16) target = $region8
    $region5: #{tpu_custom_call.1} parent=1 // loop_body
      %s20 = ssub.s32 %s15, 1
      %s21 = ssub.s32 %s15, 2
      %s22 = sadd.s32 %s15, 1
      %s23 = ssub.s32 %s15, %s22
      %p24 = scmp.eq.s32.totalorder %s23, 0
      %s26 = sadd.s32 %s25, 1
      %s27 = scalar_select %p24, %s25, %s26
      %p30 = pneg %p24
      %p31 = scmp.eq.s32.totalorder %s15, 1
      %p32 = por %p30, %p31
      %p33 = scmp.ne.s32.totalorder %s25, %s28
      %p34 = scmp.eq.s32.totalorder %s15, 0
      %p35 = por %p33, %p34
      %p36 = scmp.ne.s32.totalorder %s25, %s28
      %p37 = scmp.eq.s32.totalorder %s20, 1
      %p38 = por %p36, %p37
      %p39 = scmp.ne.s32.totalorder %s28, %s29
      %p40 = scmp.eq.s32.totalorder %s20, 0
      %p41 = por %p39, %p40
      %p42 = scmp.ne.s32.totalorder %s28, %s29
      %p43 = scmp.eq.s32.totalorder %s21, 1
      %p44 = por %p42, %p43
      %p46 = scmp.ne.s32.totalorder %s29, %s45
      %p47 = scmp.eq.s32.totalorder %s21, 0
      %p48 = por %p46, %p47
      %s50 = sadd.s32 %s49, 1
      %p53 = scmp.eq.s32.totalorder %s15, 1
      %p54 = scmp.ne.s32.totalorder %s49, %s51
      %p55 = scmp.eq.s32.totalorder %s15, 0
      %p56 = por %p54, %p55
      %p57 = scmp.ne.s32.totalorder %s49, %s51
      %p58 = scmp.eq.s32.totalorder %s20, 1
      %p59 = por %p57, %p58
      %p60 = scmp.ne.s32.totalorder %s51, %s52
      %p61 = scmp.eq.s32.totalorder %s20, 0
      %p62 = por %p60, %p61
      %p63 = scmp.ne.s32.totalorder %s51, %s52
      %p64 = scmp.eq.s32.totalorder %s21, 1
      %p65 = por %p63, %p64
      %p67 = scmp.ne.s32.totalorder %s52, %s66
      %p68 = scmp.eq.s32.totalorder %s21, 0
      %p69 = por %p67, %p68
      %s71 = sadd.s32 %s70, 1
      %p74 = scmp.eq.s32.totalorder %s15, 1
      %p75 = scmp.ne.s32.totalorder %s70, %s72
      %p76 = scmp.eq.s32.totalorder %s15, 0
      %p77 = por %p75, %p76
      %p78 = scmp.ne.s32.totalorder %s70, %s72
      %p79 = scmp.eq.s32.totalorder %s20, 1
      %p80 = por %p78, %p79
      %p81 = scmp.ne.s32.totalorder %s72, %s73
      %p82 = scmp.eq.s32.totalorder %s20, 0
      %p83 = por %p81, %p82
      %p84 = scmp.ne.s32.totalorder %s72, %s73
      %p85 = scmp.eq.s32.totalorder %s21, 1
      %p86 = por %p84, %p85
      %p88 = scmp.ne.s32.totalorder %s73, %s87
      %p89 = scmp.eq.s32.totalorder %s21, 0
      %p90 = por %p88, %p89
      %s91 = ssub.s32 %s15, %s22
      %p92 = scmp.eq.s32.totalorder %s91, 0
      %s94 = sadd.s32 %s93, 1
      %s95 = scalar_select %p92, %s93, %s94
      %p98 = pneg %p92
      %p99 = scmp.eq.s32.totalorder %s15, 1
      %p100 = por %p98, %p99
      %p101 = scmp.ne.s32.totalorder %s93, %s96
      %p102 = scmp.eq.s32.totalorder %s15, 0
      %p103 = por %p101, %p102
      %p104 = scmp.ne.s32.totalorder %s93, %s96
      %p105 = scmp.eq.s32.totalorder %s20, 1
      %p106 = por %p104, %p105
      %p107 = scmp.ne.s32.totalorder %s96, %s97
      %p108 = scmp.eq.s32.totalorder %s20, 0
      %p109 = por %p107, %p108
      %p110 = scmp.ne.s32.totalorder %s96, %s97
      %p111 = scmp.eq.s32.totalorder %s21, 1
      %p112 = por %p110, %p111
      %p114 = scmp.ne.s32.totalorder %s97, %s113
      %p115 = scmp.eq.s32.totalorder %s21, 0
      %p116 = por %p114, %p115
      %p117 = scmp.le.s32.totalorder 1, %s15
      %p118 = scmp.lt.s32.totalorder %s15, 3
      %p119 = pnand %p117, %p118
      %p120 = pneg %p119
      // Predicated region
      $region9: #{tpu_custom_call.1} parent=5 // pred_check
        _
      $region10: #{tpu_custom_call.1} parent=5 // pred_check_branch
        %122 = sbr.rel (%p119) target = $region12
      $region11: #{tpu_custom_call.1} parent=5 // pred_region
        %s123 = ssub.s32 %s15, 1
        // Predicated region
        $region13: #{tpu_custom_call.1} parent=11 // pred_check
          %p124 = pneg %p62
        $region14: #{tpu_custom_call.1} parent=11 // pred_check_branch
          %126 = sbr.rel (%p124) target = $region16
        $region15: #{tpu_custom_call.1} parent=11 // pred_region
          _
        $region16: #{tpu_custom_call.1} parent=11 // pred_fallthru
          _
        // Predicated region
        $region17: #{tpu_custom_call.1} parent=11 // pred_check
          %p127 = pneg %p83
        $region18: #{tpu_custom_call.1} parent=11 // pred_check_branch
          %129 = sbr.rel (%p127) target = $region20
        $region19: #{tpu_custom_call.1} parent=11 // pred_region
          _
        $region20: #{tpu_custom_call.1} parent=11 // pred_fallthru
          _
      $region12: #{tpu_custom_call.1} parent=5 // pred_fallthru
        _
      %p130 = scmp.lt.s32.totalorder %s15, 2
      // Predicated region
      $region21: #{tpu_custom_call.1} parent=5 // pred_check
        %p131 = pneg %p130
      $region22: #{tpu_custom_call.1} parent=5 // pred_check_branch
        %133 = sbr.rel (%p131) target = $region24
      $region23: #{tpu_custom_call.1} parent=5 // pred_region
        // Predicated region
        $region25: #{tpu_custom_call.1} parent=23 // pred_check
          %p134 = pneg %p35
        $region26: #{tpu_custom_call.1} parent=23 // pred_check_branch
          %136 = sbr.rel (%p134) target = $region28
        $region27: #{tpu_custom_call.1} parent=23 // pred_region
          %s137 = sand.u32 %s25, 1
          %s138 = scalar_lea.sflag [#allocation4], %s137
          %s139 = sand.u32 %s25, 1
          %s140 = smul.addr %s139, 8
          %s141 = scalar_lea.vmem [#allocation3], %s140
          %s143 = ssub.s32 128, 128
          %144 = vsyncadd %s138, %s143
          %s145 = smul.addr %s15, 2
          %s146 = smul.addr %s145, 64
          %s147 = scalar_lea.hbm %s0, %s146
          %s149 = sshll.u32 %s141, 4
          %s150 = int_to_ptr.vmem [resolvable:$true] %s149
          %152 = dma.hbm_to_vmem [thread:$0]  %s147, 128, %s150, %s138
        $region28: #{tpu_custom_call.1} parent=23 // pred_fallthru
          _
      $region24: #{tpu_custom_call.1} parent=5 // pred_fallthru
        _
      %p153 = scmp.le.s32.totalorder 1, %s15
      %p154 = scmp.lt.s32.totalorder %s15, 3
      %p155 = pnand %p153, %p154
      %p156 = pneg %p155
      // Predicated region
      $region29: #{tpu_custom_call.1} parent=5 // pred_check
        _
      $region30: #{tpu_custom_call.1} parent=5 // pred_check_branch
        %158 = sbr.rel (%p155) target = $region32
      $region31: #{tpu_custom_call.1} parent=5 // pred_region
        %s159 = ssub.s32 %s15, 1
        %s160 = sand.u32 %s28, 1
        %s161 = scalar_lea.sflag [#allocation4], %s160
        %s162 = sand.u32 %s28, 1
        %s163 = smul.addr %s162, 8
        %s164 = scalar_lea.vmem [#allocation3], %s163
        // Predicated region
        $region33: #{tpu_custom_call.1} parent=31 // pred_check
          %p165 = pneg %p41
        $region34: #{tpu_custom_call.1} parent=31 // pred_check_branch
          %167 = sbr.rel (%p165) target = $region36
        $region35: #{tpu_custom_call.1} parent=31 // pred_region
          %168 = dma.done %s161, 128
        $region36: #{tpu_custom_call.1} parent=31 // pred_fallthru
          _
        %s169 = sand.u32 %s28, 1
        %s170 = scalar_lea.sflag [#allocation4], %s169
        %s171 = sand.u32 %s28, 1
        %s172 = smul.addr %s171, 8
        %s173 = scalar_lea.vmem [#allocation3], %s172
        %p174 = pneg %p41
        %p175 = pneg %p38
        %p176 = pneg %p62
        %p177 = pneg %p59
        %p178 = pneg %p83
        %p179 = pneg %p80
        %p180 = pneg %p109
        %p181 = pneg %p106
        %s182 = sand.u32 %s96, 1
        %s183 = scalar_lea.sflag [#allocation5], %s182
        %s184 = sand.u32 %s96, 1
        %s185 = smul.addr %s184, 8
        %s186 = scalar_lea.vmem [#allocation6], %s185
        %v187 = vld [vmem:[%s164] sm:$0xff]
        %v188 = vmul.f32 %v187, %v187
        %v190 = vcombine.high %v188, %v188
        %vm192 = vcmask 1043456
        %v193 = vsel %vm192, %v188, 0.0
        %v194 = vsel %vm192, %v190, 0.0
        %v195 = vadd.f32 %v193, %v194
        %196 = vadd.xlane.f32.xlu0 %v195
        %v197 = vpop.xlane.xlu0 %196
        %vm198 = vcmask 3072
        %199 = vst.msk [vmem:[#allocation2] sm:$0xf] %vm198, %v197
        %v200 = vld [vmem:[#allocation2] sm:$0xf]
        %v201 = vrsqrt.pop %v200
        %v202 = vmul.f32 %v200, %v201
        %vm203 = vcmp.eq.f32.partialorder %v200, inf
        %v204 = vsel %vm203, %v200, %v202
        %vm205 = vcmp.eq.f32.partialorder %v200, 0.0
        %v206 = vand.u32 %v200, 2147483648
        %v207 = vsel %vm205, %v206, %v204
        %v208 = vsel %vm198, %v207, 0.0
        %v209 = vrot.slane %v208, 4
        %v210 = vadd.f32 %v208, %v209
        %v211 = vrot.slane %v210, 2
        %v212 = vadd.f32 %v210, %v211
        %v213 = vrot.slane %v212, 1
        %v214 = vadd.f32 %v212, %v213
        %v215 = vrcp.pop 4.0
        %v216 = vmul.f32 %v214, %v215
        %v217 = vadd.f32 %v216, 1e-06
        %v218 = vrcp.pop %v217
        %v219 = vmul.f32 %v207, %v218
        %v220 = vld [vmem:[%s1] sm:$0xf]
        %v221 = vmul.f32 %v220, %v219
        %v222 = vadd.f32 %v221, 1.0
        %223 = vst.msk [vmem:[#allocation2] sm:$0xf] %vm198, %v222
        %v224 = vld [vmem:[%s164] sm:$0xff]
        %v225 = vld [vmem:[#allocation2] sm:$0xf]
        %v226 = vld [vmem:[%s2] sm:$0xf]
        %228 = vset.pattern.permute.xlu0 0
        %229 = vperm.xlu0 %228, %v225
        %v230 = vpop.permute.xlu0 %229
        %v232 = vunpack.c.l.s4 839922192
        %v233 = vunpack.c.0.s8 %v232
        %v234 = vlaneseq
        %v235 = vshrl.u32 %v234, 7
        %v236 = vsub.s32 %v233, %v235
        %v237 = vrot.slane %v230, %v236
        %v239 = vmul.f32 %v224, %v237
        %241 = vset.pattern.permute.xlu0 0
        %242 = vperm.xlu0 %241, %v226
        %v243 = vpop.permute.xlu0 %242
        %v245 = vunpack.c.l.s4 839922192
        %v246 = vunpack.c.0.s8 %v245
        %v247 = vlaneseq
        %v248 = vshrl.u32 %v247, 7
        %v249 = vsub.s32 %v246, %v248
        %v250 = vrot.slane %v243, %v249
        %v252 = vadd.f32 %v239, %v250
        %253 = vst [vmem:[%s186] sm:$0xff] %v252
        %s254 = sand.u32 %s96, 1
        %s255 = scalar_lea.sflag [#allocation5], %s254
        %s256 = sand.u32 %s96, 1
        %s257 = smul.addr %s256, 8
        %s258 = scalar_lea.vmem [#allocation6], %s257
        // Predicated region
        $region37: #{tpu_custom_call.1} parent=31 // pred_check
          %p259 = pneg %p106
        $region38: #{tpu_custom_call.1} parent=31 // pred_check_branch
          %261 = sbr.rel (%p259) target = $region40
        $region39: #{tpu_custom_call.1} parent=31 // pred_region
          %s263 = ssub.s32 128, 128
          %264 = vsyncadd %s255, %s263
          %s265 = smul.addr %s20, 2
          %s266 = smul.addr %s265, 64
          %s267 = scalar_lea.hbm %s3, %s266
          %s269 = sshll.u32 %s258, 4
          %s270 = int_to_ptr.vmem [resolvable:$true] %s269
          %272 = dma.vmem_to_hbm [thread:$0]  %s270, 128, %s267, %s255
        $region40: #{tpu_custom_call.1} parent=31 // pred_fallthru
          _
      $region32: #{tpu_custom_call.1} parent=5 // pred_fallthru
        _
      %p273 = scmp.le.s32.totalorder 2, %s15
      // Predicated region
      $region41: #{tpu_custom_call.1} parent=5 // pred_check
        %p274 = pneg %p273
      $region42: #{tpu_custom_call.1} parent=5 // pred_check_branch
        %276 = sbr.rel (%p274) target = $region44
      $region43: #{tpu_custom_call.1} parent=5 // pred_region
        %s277 = ssub.s32 %s15, 2
        // Predicated region
        $region45: #{tpu_custom_call.1} parent=43 // pred_check
          %p278 = pneg %p112
        $region46: #{tpu_custom_call.1} parent=43 // pred_check_branch
          %280 = sbr.rel (%p278) target = $region48
        $region47: #{tpu_custom_call.1} parent=43 // pred_region
          %s281 = sand.u32 %s97, 1
          %s282 = scalar_lea.sflag [#allocation5], %s281
          %s283 = sand.u32 %s97, 1
          %s284 = smul.addr %s283, 8
          %s285 = scalar_lea.vmem [#allocation6], %s284
          %286 = dma.done %s282, 128
        $region48: #{tpu_custom_call.1} parent=43 // pred_fallthru
          _
      $region44: #{tpu_custom_call.1} parent=5 // pred_fallthru
        _
    $region6: #{tpu_custom_call.1} parent=1 // loop_footer
      %s19 = sadd.s32 1, %s15
    $region7: #{tpu_custom_call.1} parent=1 // loop_footer_branch
      %14 = sbr.rel target = $region3
    $region8: #{tpu_custom_call.1} parent=1 // loop_exit
      _
    %287 = vsyncpa [#allocation4], 1
    %s288 = scalar_lea.sflag [#allocation4], 1
    %289 = vsyncpa %s288, 1
    %290 = vsyncpa [#allocation5], 1
    %s291 = scalar_lea.sflag [#allocation5], 1
    %292 = vsyncpa %s291, 1

</llo_original>
